<compile_context>
chip_gen: v7x
topology: tpu7x:2x2x1
jax: 0.10.0
libtpu: 0.0.40
codegen_flags: <defaults>
</compile_context>

<pallas_src>
import functools

import jax
import jax.numpy as jnp
from jax import lax
from jax.experimental import pallas as pl
from jax.experimental.pallas import tpu as pltpu


def _round_up(x, m):
    return ((x + m - 1) // m) * m


def _cdiv(a, b):
    return -(-a // b)


def _attention_kernel(x_ref, w1_ref, b1_ref, w2_ref, b2_ref, o_ref, acc_ref, *,
                      hw: int, thw: int, num_k: int, mask_last: bool,
                      inv_hw: float, inv_temp: float):
    k = pl.program_id(1)

    @pl.when(k == 0)
    def _init():
        acc_ref[...] = jnp.zeros_like(acc_ref)

    def _accum(tile_f32):
        # Partial spatial sum for this (TN, C, THW) tile -> (TN, C).
        acc_ref[...] += jnp.sum(tile_f32, axis=-1)

    if mask_last:
        # Hot path: interior tiles need no masking.
        @pl.when(k < num_k - 1)
        def _interior():
            _accum(x_ref[...].astype(jnp.float32))

        # Last tile: zero the lanes past the true HW extent before summing.
        @pl.when(k == num_k - 1)
        def _ragged():
            cols = lax.broadcasted_iota(jnp.int32, (1, 1, thw), 2) + k * thw
            tile = jnp.where(cols < hw, x_ref[...].astype(jnp.float32), 0.0)
            _accum(tile)
    else:
        _accum(x_ref[...].astype(jnp.float32))

    @pl.when(k == num_k - 1)
    def _epilogue():
        pooled = acc_ref[...] * inv_hw                       # global average pool
        h = jnp.dot(pooled, w1_ref[...], preferred_element_type=jnp.float32)
        h = jnp.maximum(h + b1_ref[...], 0.0)                # Linear + ReLU
        s = jnp.dot(h, w2_ref[...], preferred_element_type=jnp.float32)
        s = (s + b2_ref[...]) * inv_temp                     # Linear, / temperature
        s = s - jnp.max(s, axis=-1, keepdims=True)           # stable softmax
        e = jnp.exp(s)
        den = jnp.sum(e, axis=-1, keepdims=True)
        inv = pl.reciprocal(den, approx=True)                # EUP slot
        inv = inv * (2.0 - den * inv)                        # Newton step -> f32 accurate
        o_ref[...] = (e * inv).astype(o_ref.dtype)


def _choose_tiles(n, c, hw, itemsize, budget):
    """Pick (tn, thw) from a VMEM byte budget for one (tn, c, thw) x tile."""
    # Row tile: full N when tiny, otherwise a multiple of 8 giving >= 2 row
    # blocks (v7x megacore shards the "parallel" axis), capped for the MXU.
    if n <= 8:
        tn = n
    else:
        tn = min(256, _round_up((n + 1) // 2, 8))
    min_cols = hw if hw < 128 else 128
    while tn > 8 and tn * c * min_cols * itemsize > budget:
        tn = max(8, _round_up(tn // 2, 8))
    max_cols = max(min_cols, budget // max(1, tn * c * itemsize))
    if max_cols >= hw:
        thw = hw                                   # whole spatial extent, 1 step
    else:
        thw = min((hw // 128) * 128, max(128, (max_cols // 128) * 128))
    return tn, thw


def attention_layer_forward(x_nchw, w1, b1, w2, b2, temperature=1.0,
                            tile_n=None, tile_hw=None,
                            x_tile_budget_bytes=4 << 20):
    """x_nchw: (N, C, H, W) in its native dtype (f32/bf16).
    w1: (C, hidden), b1: (hidden,), w2: (hidden, nof), b2: (nof,)
    Returns softmax scores of shape (N, nof), float32.
    """
    n, c, h, w = x_nchw.shape
    hw = h * w
    hidden = w1.shape[1]
    nof = w2.shape[1]
    itemsize = jnp.dtype(x_nchw.dtype).itemsize

    # Free view: no pad, no dtype cast, no extra HBM traffic.
    x = x_nchw.reshape(n, c, hw)

    tn, thw = _choose_tiles(n, c, hw, itemsize, int(x_tile_budget_bytes))
    if tile_n is not None:                         # test/tuning override
        tn = min(n, max(1, int(tile_n)))
        if tn < n:
            tn = min(n, _round_up(tn, 8))
    if tile_hw is not None:                        # test/tuning override
        t = min(hw, max(1, int(tile_hw)))
        if t >= hw or hw <= 128:
            thw = hw
        else:
            thw = min((hw // 128) * 128, max(128, (t // 128) * 128))

    grid_rows = _cdiv(n, tn)
    num_k = _cdiv(hw, thw)
    mask_last = (hw % thw) != 0

    w1f = w1.astype(jnp.float32)
    w2f = w2.astype(jnp.float32)
    b1_2d = b1.reshape(1, hidden).astype(jnp.float32)   # lane-dense bias rows
    b2_2d = b2.reshape(1, nof).astype(jnp.float32)

    kernel = functools.partial(
        _attention_kernel, hw=hw, thw=thw, num_k=num_k, mask_last=mask_last,
        inv_hw=1.0 / float(hw), inv_temp=1.0 / float(temperature))

    # VMEM accounting: double-buffered x tile + (double-buffered) weights/biases
    # + accumulator + double-buffered output tile, plus margin.
    sub = max(1, 32 // itemsize)                   # sublane packing granularity
    x_tile_bytes = tn * _round_up(c, sub) * _round_up(thw, 128) * itemsize
    w_bytes = 4 * (_round_up(c, 8) * _round_up(hidden, 128)
                   + _round_up(hidden, 8) * _round_up(nof, 128)
                   + 8 * _round_up(hidden, 128)
                   + 8 * _round_up(nof, 128))
    small_bytes = 4 * _round_up(tn, 8) * (_round_up(c, 128) + 2 * _round_up(nof, 128))
    vmem_limit = int(min(64 << 20,
                         max(32 << 20,
                             2 * x_tile_bytes + 2 * w_bytes + small_bytes + (8 << 20))))

    cost = pl.CostEstimate(
        flops=int(n * c * hw + 2 * n * (c * hidden + hidden * nof)),
        transcendentals=int(n * nof),
        bytes_accessed=int(itemsize * n * c * hw
                           + 4 * (c * hidden + hidden * nof + hidden + nof)
                           + 4 * n * nof),
    )

    out = pl.pallas_call(
        kernel,
        out_shape=jax.ShapeDtypeStruct((n, nof), jnp.float32),
        grid=(grid_rows, num_k),
        in_specs=[
            pl.BlockSpec((tn, c, thw), lambda i, k: (i, 0, k)),   # streamed x tiles
            pl.BlockSpec((c, hidden), lambda i, k: (0, 0)),       # w1 (resident)
            pl.BlockSpec((1, hidden), lambda i, k: (0, 0)),       # b1
            pl.BlockSpec((hidden, nof), lambda i, k: (0, 0)),     # w2
            pl.BlockSpec((1, nof), lambda i, k: (0, 0)),          # b2
        ],
        out_specs=pl.BlockSpec((tn, nof), lambda i, k: (i, 0)),
        scratch_shapes=[pltpu.VMEM((tn, c), jnp.float32)],        # pooled-sum accumulator
        compiler_params=pltpu.CompilerParams(
            dimension_semantics=("parallel", "arbitrary"),
            vmem_limit_bytes=vmem_limit),
        cost_estimate=cost,
    )(x, w1f, b1_2d, w2f, b2_2d)
    return out


def init_params(key, c_dim, hidden_dim, nof_kernels):
    """Deterministic synthetic init mimicking nn.Linear default (uniform)."""
    k1, k2, k3, k4 = jax.random.split(key, 4)
    bound1 = 1.0 / (c_dim ** 0.5)
    bound2 = 1.0 / (hidden_dim ** 0.5)
    # Stored already transposed to (in, out) for the kernel.
    w1 = jax.random.uniform(k1, (c_dim, hidden_dim), jnp.float32, -bound1, bound1)
    b1 = jax.random.uniform(k2, (hidden_dim,), jnp.float32, -bound1, bound1)
    w2 = jax.random.uniform(k3, (hidden_dim, nof_kernels), jnp.float32, -bound2, bound2)
    b2 = jax.random.uniform(k4, (nof_kernels,), jnp.float32, -bound2, bound2)
    return w1, b1, w2, b2


def _reference(x, w1, b1, w2, b2, temperature):
    pooled = jnp.mean(x.astype(jnp.float32), axis=(2, 3))
    h = jnp.maximum(pooled @ w1 + b1, 0.0)
    return jax.nn.softmax((h @ w2 + b2) / temperature, axis=-1)


if __name__ == "__main__":
    key = jax.random.PRNGKey(0)
    kx, kp, kx2 = jax.random.split(key, 3)

    N, C, H, W = 2, 4, 16, 16
    HIDDEN, NOF_KERNELS = 32, 8

    x = jax.random.normal(kx, (N, C, H, W), jnp.float32)
    w1, b1, w2, b2 = init_params(kp, C, HIDDEN, NOF_KERNELS)

    # 1) Auto-tiled path: whole HW fits in one block (single grid step, no mask).
    out = jax.block_until_ready(
        attention_layer_forward(x, w1, b1, w2, b2, temperature=1.0))
    ref = _reference(x, w1, b1, w2, b2, 1.0)
    assert out.shape == (N, NOF_KERNELS)
    assert jnp.allclose(out, ref, atol=2e-5, rtol=2e-5)
    assert jnp.allclose(jnp.sum(out, axis=-1), 1.0, atol=2e-5)

    # 2) Forced multi-step streaming with a ragged last HW tile (144 = 128 + 16)
    #    and a partial row block (N=10 with tn=8) — exercises the in-kernel lane
    #    mask, the accumulator, and partial edge blocks with zero wrapper padding.
    N2, H2, W2 = 10, 12, 12
    x2 = jax.random.normal(kx2, (N2, C, H2, W2), jnp.float32)
    out2 = jax.block_until_ready(
        attention_layer_forward(x2, w1, b1, w2, b2, temperature=2.0,
                                tile_n=8, tile_hw=128))
    ref2 = _reference(x2, w1, b1, w2, b2, 2.0)
    assert out2.shape == (N2, NOF_KERNELS)
    assert jnp.allclose(out2, ref2, atol=2e-5, rtol=2e-5)
    assert jnp.allclose(jnp.sum(out2, axis=-1), 1.0, atol=2e-5)

    print("KERNEL_OK")
</pallas_src>

<mosaic_0001>
module attributes {stable_mosaic.version = 11 : i64} {
  func.func @_attention_kernel(%arg0: i32, %arg1: i32, %arg2: memref<2x4x256xf32, #tpu.memory_space<vmem>>, %arg3: memref<4x32xf32, #tpu.memory_space<vmem>>, %arg4: memref<1x32xf32, #tpu.memory_space<vmem>>, %arg5: memref<32x8xf32, #tpu.memory_space<vmem>>, %arg6: memref<1x8xf32, #tpu.memory_space<vmem>>, %arg7: memref<2x8xf32, #tpu.memory_space<vmem>>, %arg8: memref<2x4xf32, #tpu.memory_space<vmem>>) attributes {dimension_semantics = [#tpu.dimension_semantics<parallel>, #tpu.dimension_semantics<arbitrary>], iteration_bounds = array<i64: 1, 1>, scalar_prefetch = 0 : i64, scratch_operands = 1 : i64, tpu.core_type = #tpu.core_type<tc>, window_params = [{transform_indices = @transform_0, window_bounds = array<i64: 2, 4, 256>}, {pipeline_mode = #tpu.pipeline_mode<synchronous>, transform_indices = @transform_1, window_bounds = array<i64: 4, 32>}, {pipeline_mode = #tpu.pipeline_mode<synchronous>, transform_indices = @transform_2, window_bounds = array<i64: 1, 32>}, {pipeline_mode = #tpu.pipeline_mode<synchronous>, transform_indices = @transform_3, window_bounds = array<i64: 32, 8>}, {pipeline_mode = #tpu.pipeline_mode<synchronous>, transform_indices = @transform_4, window_bounds = array<i64: 1, 8>}, {transform_indices = @transform_5, window_bounds = array<i64: 2, 8>}]} {
    %c0_i32 = arith.constant 0 : i32
    %0 = arith.cmpi eq, %arg1, %c0_i32 : i32
    %1 = arith.extui %0 : i1 to i32
    %c0_i32_0 = arith.constant 0 : i32
    %2 = arith.cmpi ne, %1, %c0_i32_0 : i32
    scf.if %2 {
      %cst_9 = arith.constant 0.000000e+00 : f32
      %11 = vector.broadcast %cst_9 : f32 to vector<2x4xf32>
      %c0_10 = arith.constant 0 : index
      %c0_11 = arith.constant 0 : index
      %12 = vector.load %arg8[%c0_10, %c0_11] : memref<2x4xf32, #tpu.memory_space<vmem>>, vector<2x4xf32>
      tpu.vector_store %arg8[%c0_10, %c0_11], %11 {strides = array<i32>} : memref<2x4xf32, #tpu.memory_space<vmem>>, vector<2x4xf32>,
    } else {
    }
    %c0 = arith.constant 0 : index
    %c0_1 = arith.constant 0 : index
    %c0_2 = arith.constant 0 : index
    %3 = vector.load %arg2[%c0, %c0_1, %c0_2] : memref<2x4x256xf32, #tpu.memory_space<vmem>>, vector<2x4x256xf32>
    %c0_3 = arith.constant 0 : index
    %c0_4 = arith.constant 0 : index
    %4 = vector.load %arg8[%c0_3, %c0_4] : memref<2x4xf32, #tpu.memory_space<vmem>>, vector<2x4xf32>
    %cst = arith.constant dense<0.000000e+00> : vector<2x4xf32>
    %5 = vector.multi_reduction <add>, %3, %cst [2] : vector<2x4x256xf32> to vector<2x4xf32>
    %6 = arith.addf %4, %5 : vector<2x4xf32>
    %c0_5 = arith.constant 0 : index
    %c0_6 = arith.constant 0 : index
    %7 = vector.load %arg8[%c0_5, %c0_6] : memref<2x4xf32, #tpu.memory_space<vmem>>, vector<2x4xf32>
    tpu.vector_store %arg8[%c0_5, %c0_6], %6 {strides = array<i32>} : memref<2x4xf32, #tpu.memory_space<vmem>>, vector<2x4xf32>,
    %c0_i32_7 = arith.constant 0 : i32
    %8 = arith.cmpi eq, %arg1, %c0_i32_7 : i32
    %9 = arith.extui %8 : i1 to i32
    %c0_i32_8 = arith.constant 0 : i32
    %10 = arith.cmpi ne, %9, %c0_i32_8 : i32
    scf.if %10 {
      %c0_9 = arith.constant 0 : index
      %c0_10 = arith.constant 0 : index
      %11 = vector.load %arg8[%c0_9, %c0_10] : memref<2x4xf32, #tpu.memory_space<vmem>>, vector<2x4xf32>
      %cst_11 = arith.constant 3.906250e-03 : f32
      %12 = vector.broadcast %cst_11 : f32 to vector<2x4xf32>
      %13 = arith.mulf %11, %12 : vector<2x4xf32>
      %c0_12 = arith.constant 0 : index
      %c0_13 = arith.constant 0 : index
      %14 = vector.load %arg3[%c0_12, %c0_13] : memref<4x32xf32, #tpu.memory_space<vmem>>, vector<4x32xf32>
      %cst_14 = arith.constant dense<0.000000e+00> : vector<2x32xf32>
      %15 = tpu.matmul %13, %14, %cst_14 {dimension_numbers = #tpu.dot_dimension_numbers<[1], [0], [0], [1], [0, 0, 1, 1], [], []>} : vector<2x4xf32>, vector<4x32xf32>, vector<2x32xf32> -> vector<2x32xf32>
      %c0_15 = arith.constant 0 : index
      %c0_16 = arith.constant 0 : index
      %16 = vector.load %arg4[%c0_15, %c0_16] : memref<1x32xf32, #tpu.memory_space<vmem>>, vector<1x32xf32>
      %17 = vector.broadcast %16 : vector<1x32xf32> to vector<2x32xf32>
      %18 = arith.addf %15, %17 : vector<2x32xf32>
      %cst_17 = arith.constant 0.000000e+00 : f32
      %19 = vector.broadcast %cst_17 : f32 to vector<2x32xf32>
      %20 = arith.maximumf %18, %19 : vector<2x32xf32>
      %c0_18 = arith.constant 0 : index
      %c0_19 = arith.constant 0 : index
      %21 = vector.load %arg5[%c0_18, %c0_19] : memref<32x8xf32, #tpu.memory_space<vmem>>, vector<32x8xf32>
      %cst_20 = arith.constant dense<0.000000e+00> : vector<2x8xf32>
      %22 = tpu.matmul %20, %21, %cst_20 {dimension_numbers = #tpu.dot_dimension_numbers<[1], [0], [0], [1], [0, 0, 1, 1], [], []>} : vector<2x32xf32>, vector<32x8xf32>, vector<2x8xf32> -> vector<2x8xf32>
      %c0_21 = arith.constant 0 : index
      %c0_22 = arith.constant 0 : index
      %23 = vector.load %arg6[%c0_21, %c0_22] : memref<1x8xf32, #tpu.memory_space<vmem>>, vector<1x8xf32>
      %24 = vector.broadcast %23 : vector<1x8xf32> to vector<2x8xf32>
      %25 = arith.addf %22, %24 : vector<2x8xf32>
      %cst_23 = arith.constant 1.000000e+00 : f32
      %26 = vector.broadcast %cst_23 : f32 to vector<2x8xf32>
      %27 = arith.mulf %25, %26 : vector<2x8xf32>
      %cst_24 = arith.constant dense<0xFF800000> : vector<2xf32>
      %28 = vector.multi_reduction <maximumf>, %27, %cst_24 [1] : vector<2x8xf32> to vector<2xf32>
      %29 = vector.shape_cast %28 : vector<2xf32> to vector<2x1xf32>
      %30 = vector.broadcast %29 : vector<2x1xf32> to vector<2x8xf32>
      %31 = arith.subf %27, %30 : vector<2x8xf32>
      %32 = math.exp %31 : vector<2x8xf32>
      %cst_25 = arith.constant dense<0.000000e+00> : vector<2xf32>
      %33 = vector.multi_reduction <add>, %32, %cst_25 [1] : vector<2x8xf32> to vector<2xf32>
      %34 = vector.shape_cast %33 : vector<2xf32> to vector<2x1xf32>
      %35 = tpu.reciprocal %34 {approx = true} : vector<2x1xf32> -> vector<2x1xf32>
      %36 = arith.mulf %34, %35 : vector<2x1xf32>
      %cst_26 = arith.constant 2.000000e+00 : f32
      %37 = vector.broadcast %cst_26 : f32 to vector<2x1xf32>
      %38 = arith.subf %37, %36 : vector<2x1xf32>
      %39 = arith.mulf %35, %38 : vector<2x1xf32>
      %40 = vector.broadcast %39 : vector<2x1xf32> to vector<2x8xf32>
      %41 = arith.mulf %32, %40 : vector<2x8xf32>
      %c0_27 = arith.constant 0 : index
      %c0_28 = arith.constant 0 : index
      %42 = vector.load %arg7[%c0_27, %c0_28] : memref<2x8xf32, #tpu.memory_space<vmem>>, vector<2x8xf32>
      tpu.vector_store %arg7[%c0_27, %c0_28], %41 {strides = array<i32>} : memref<2x8xf32, #tpu.memory_space<vmem>>, vector<2x8xf32>,
    } else {
    }
    return
  }
  func.func @transform_0(%arg0: i32, %arg1: i32) -> (i32, i32, i32) {
    %c0_i32 = arith.constant 0 : i32
    %c0_i32_0 = arith.constant 0 : i32
    return %arg0, %c0_i32, %arg1 : i32, i32, i32
  }
  func.func @transform_1(%arg0: i32, %arg1: i32) -> (i32, i32) {
    %c0_i32 = arith.constant 0 : i32
    %c0_i32_0 = arith.constant 0 : i32
    %c0_i32_1 = arith.constant 0 : i32
    return %c0_i32, %c0_i32_0 : i32, i32
  }
  func.func @transform_2(%arg0: i32, %arg1: i32) -> (i32, i32) {
    %c0_i32 = arith.constant 0 : i32
    %c0_i32_0 = arith.constant 0 : i32
    %c0_i32_1 = arith.constant 0 : i32
    return %c0_i32, %c0_i32_0 : i32, i32
  }
  func.func @transform_3(%arg0: i32, %arg1: i32) -> (i32, i32) {
    %c0_i32 = arith.constant 0 : i32
    %c0_i32_0 = arith.constant 0 : i32
    %c0_i32_1 = arith.constant 0 : i32
    return %c0_i32, %c0_i32_0 : i32, i32
  }
  func.func @transform_4(%arg0: i32, %arg1: i32) -> (i32, i32) {
    %c0_i32 = arith.constant 0 : i32
    %c0_i32_0 = arith.constant 0 : i32
    %c0_i32_1 = arith.constant 0 : i32
    return %c0_i32, %c0_i32_0 : i32, i32
  }
  func.func @transform_5(%arg0: i32, %arg1: i32) -> (i32, i32) {
    %c0_i32 = arith.constant 0 : i32
    %c0_i32_0 = arith.constant 0 : i32
    return %arg0, %c0_i32 : i32, i32
  }
}

</mosaic_0001>

<llo_original>
// kernel: tpu_custom_call.1
$region0: #{tpu_custom_call.1}
  #allocation0 [shape = 'u32[]', space=smem, size = 0x4, offset = 0x4, fixed_abs, tag = 'smem constant byte address 0x4 - core index']
  #allocation1 [shape = 'u32[144,128]{1,0:T(1,128)}', space=vmem, size = 0x12000, scoped, tag = 'internal scratch']
  #allocation2 [shape = 'f32[2,4]{1,0:T(2,128)}', space=vmem, size = 0x400, scoped, tag = 'scratch operand']
  %s0 = inlined_call_operand.vmem [shape: f32[2,4,256], index: 0, kind: input, shape index: {}]
  %s1 = inlined_call_operand.vmem [shape: f32[4,32], index: 1, kind: input, shape index: {}]
  %s2 = inlined_call_operand.vmem [shape: f32[1,32], index: 2, kind: input, shape index: {}]
  %s3 = inlined_call_operand.vmem [shape: f32[32,8], index: 3, kind: input, shape index: {}]
  %s4 = inlined_call_operand.vmem [shape: f32[1,8], index: 4, kind: input, shape index: {}]
  %s5 = inlined_call_operand.hbm [shape: f32[2,8], index: 5, kind: output, shape index: {}]
  %s6 = sld [smem:[#allocation0]]
  $region38: #{tpu_custom_call.1} parent=0
    _
  %s8 = ssub.s32 1, %s6
  %s9 = scalar_select 0, %s8, %s6
  $region1: #{tpu_custom_call.1} parent=0
    #allocation3 [shape = 'u8[1024]{0}', space=vmem, size = 0x400, scoped, tag = 'output window, operand 0, single buffered']
    #allocation4 [shape = 's32[1]{0}', space=sflag, size = 0x4, scoped, tag = 'scoped memory for tpu_custom_call.1']
    %10 = vsyncpa [#allocation4], 0
    // Predicated region
    $region2: #{tpu_custom_call.1} parent=1 // pred_check
      _
    $region3: #{tpu_custom_call.1} parent=1 // pred_check_branch
      %12 = sbr.rel (0) target = $region5
    $region4: #{tpu_custom_call.1} parent=1 // pred_region
      _
    $region5: #{tpu_custom_call.1} parent=1 // pred_fallthru
      _
    // Predicated region
    $region6: #{tpu_custom_call.1} parent=1 // pred_check
      _
    $region7: #{tpu_custom_call.1} parent=1 // pred_check_branch
      %14 = sbr.rel (0) target = $region9
    $region8: #{tpu_custom_call.1} parent=1 // pred_region
      _
    $region9: #{tpu_custom_call.1} parent=1 // pred_fallthru
      _
    // Predicated region
    $region10: #{tpu_custom_call.1} parent=1 // pred_check
      _
    $region11: #{tpu_custom_call.1} parent=1 // pred_check_branch
      %16 = sbr.rel (0) target = $region13
    $region12: #{tpu_custom_call.1} parent=1 // pred_region
      _
    $region13: #{tpu_custom_call.1} parent=1 // pred_fallthru
      _
    // Predicated region
    $region14: #{tpu_custom_call.1} parent=1 // pred_check
      _
    $region15: #{tpu_custom_call.1} parent=1 // pred_check_branch
      %18 = sbr.rel (0) target = $region17
    $region16: #{tpu_custom_call.1} parent=1 // pred_region
      _
    $region17: #{tpu_custom_call.1} parent=1 // pred_fallthru
      _
    // Predicated region
    $region18: #{tpu_custom_call.1} parent=1 // pred_check
      _
    $region19: #{tpu_custom_call.1} parent=1 // pred_check_branch
      %20 = sbr.rel (0) target = $region21
    $region20: #{tpu_custom_call.1} parent=1 // pred_region
      _
    $region21: #{tpu_custom_call.1} parent=1 // pred_fallthru
      _
    %p21 = scmp.eq.s32.totalorder 0, 0
    // Predicated region
    $region22: #{tpu_custom_call.1} parent=1 // pred_check
      %p22 = pneg %p21
    $region23: #{tpu_custom_call.1} parent=1 // pred_check_branch
      %24 = sbr.rel (%p22) target = $region25
    $region24: #{tpu_custom_call.1} parent=1 // pred_region
      %vm25 = vcmask 25600
      %26 = vst.msk [vmem:[#allocation2] sm:$0x3] %vm25, 0.0
    $region25: #{tpu_custom_call.1} parent=1 // pred_fallthru
      _
    %v27 = vld [vmem:[%s0] sm:$0xff]
    %v28 = vld [vmem:[%s0 + $0x8] sm:$0xff]
    %v29 = vld [vmem:[#allocation2] sm:$0x3]
    %v32 = vcombine.high %v27, %v27
    %v33 = vcombine.high %v28, %v28
    %vm36 = vcmask 1043456
    %v37 = vsel %vm36, %v27, 0.0
    %v38 = vsel %vm36, %v32, 0.0
    %v39 = vadd.f32 %v37, %v38
    %40 = vadd.xlane.f32.xlu0 %v39
    %v41 = vpop.xlane.xlu0 %40
    %v42 = vsel %vm36, %v28, 0.0
    %v43 = vsel %vm36, %v33, 0.0
    %v44 = vadd.f32 %v42, %v43
    %45 = vadd.xlane.f32.xlu0 %v44
    %v46 = vpop.xlane.xlu0 %45
    %v49 = vlaneseq
    %v50 = vand.u32 %v49, 127
    %v51 = vlaneseq
    %v52 = vshrl.u32 %v51, 7
    %v53 = vsub.s32 %v50, %v52
    %v54 = vrot.slane %v41, %v53
    %v55 = vlaneseq
    %v56 = vshrl.u32 %v55, 7
    %v57 = vsub.s32 %v50, %v56
    %v58 = vrot.slane %v46, %v57
    %vm59 = vcmask 1041409
    %v60 = vsel %vm59, %v58, %v54
    %v62 = vadd.f32 %v29, %v60
    %vm63 = vcmask 25600
    %64 = vst.msk [vmem:[#allocation2] sm:$0x3] %vm63, %v62
    // Predicated region
    $region26: #{tpu_custom_call.1} parent=1 // pred_check
      %p65 = pneg %p21
    $region27: #{tpu_custom_call.1} parent=1 // pred_check_branch
      %67 = sbr.rel (%p65) target = $region29
    $region28: #{tpu_custom_call.1} parent=1 // pred_region
      %v68 = vld [vmem:[#allocation2] sm:$0x3]
      %v69 = vmul.f32 %v68, 0.00390625
      %v70 = vld [vmem:[%s1] sm:$0xf]
      %v71 = vld [vmem:[%s2] sm:$0x1]
      %v73 = vlaneseq
      %v74 = vshrl.u32 %v73, 7
      %v75 = vsub.s32 0, %v74
      %v76 = vrot.slane %v71, %v75
      %vm78 = vcmask 31744
      %v80 = vsel %vm78, %v69, 0
      %v83 = vsel %vm36, %v70, 0
      %85 = vmatprep.subr.mxu0 0.0
      %86 = vmatpush1.msra.mxu0 %v83
      %87 = vmatprep.subr.mxu0 0.0
      %88 = vmatpush1.msra.mxu0 0.0
      %89 = vmatprep.subr.mxu0 0.0
      %90 = vmatpush1.msra.mxu0 0.0
      %91 = vmatprep.subr.mxu0 0.0
      %92 = vmatpush1.msra.mxu0 0.0
      %93 = vmatprep.subr.mxu0 0.0
      %94 = vmatpush1.msra.mxu0 0.0
      %95 = vmatprep.subr.mxu0 0.0
      %96 = vmatpush1.msra.mxu0 0.0
      %97 = vmatprep.subr.mxu0 0.0
      %98 = vmatpush1.msra.mxu0 0.0
      %99 = vmatprep.subr.mxu0 0.0
      %100 = vmatpush1.msra.mxu0 0.0
      %101 = vmatprep.subr.mxu0 0.0
      %102 = vmatpush1.msra.mxu0 0.0
      %103 = vmatprep.subr.mxu0 0.0
      %104 = vmatpush1.msra.mxu0 0.0
      %105 = vmatprep.subr.mxu0 0.0
      %106 = vmatpush1.msra.mxu0 0.0
      %107 = vmatprep.subr.mxu0 0.0
      %108 = vmatpush1.msra.mxu0 0.0
      %109 = vmatprep.subr.mxu0 0.0
      %110 = vmatpush1.msra.mxu0 0.0
      %111 = vmatprep.subr.mxu0 0.0
      %112 = vmatpush1.msra.mxu0 0.0
      %113 = vmatprep.subr.mxu0 0.0
      %114 = vmatpush1.msra.mxu0 0.0
      %115 = vmatprep.subr.mxu0 0.0
      %116 = vmatpush1.msra.mxu0 0.0
      %117 = vmatprep.subr.mxu0 0.0
      %118 = vmatpush1.msra.mxu0 0.0
      %119 = vmatprep.subr.mxu0 0.0
      %120 = vmatpush1.msra.mxu0 0.0
      %121 = vmatprep.subr.mxu0 0.0
      %122 = vmatpush1.msra.mxu0 0.0
      %123 = vmatprep.subr.mxu0 0.0
      %124 = vmatpush1.msra.mxu0 0.0
      %125 = vmatprep.subr.mxu0 0.0
      %126 = vmatpush1.msra.mxu0 0.0
      %127 = vmatprep.subr.mxu0 0.0
      %128 = vmatpush1.msra.mxu0 0.0
      %129 = vmatprep.subr.mxu0 0.0
      %130 = vmatpush1.msra.mxu0 0.0
      %131 = vmatprep.subr.mxu0 0.0
      %132 = vmatpush1.msra.mxu0 0.0
      %133 = vmatprep.subr.mxu0 0.0
      %134 = vmatpush1.msra.mxu0 0.0
      %135 = vmatprep.subr.mxu0 0.0
      %136 = vmatpush1.msra.mxu0 0.0
      %137 = vmatprep.subr.mxu0 0.0
      %138 = vmatpush1.msra.mxu0 0.0
      %139 = vmatprep.subr.mxu0 0.0
      %140 = vmatpush1.msra.mxu0 0.0
      %141 = vmatprep.subr.mxu0 0.0
      %142 = vmatpush1.msra.mxu0 0.0
      %143 = vmatprep.subr.mxu0 0.0
      %144 = vmatpush1.msra.mxu0 0.0
      %145 = vmatprep.subr.mxu0 0.0
      %146 = vmatpush1.msra.mxu0 0.0
      %147 = vmatprep.subr.mxu0 0.0
      %148 = vmatpush1.msra.mxu0 0.0
      %149 = vmatprep.mubr.f32.mxu0 0.0
      %150 = vmatmul.mubr.f32.gmra.mrb[0].mxu0 %v80
      %v151 = vpop.f32.mrb[0].mxu0
      %v152 = vadd.f32 %v76, %v151
      %v153 = vpop.f32.mrb[0].mxu0
      %154 = vdwg.mxu0
      %v155 = vmax.f32 %v152, 0.0
      %v156 = vld [vmem:[%s3] sm:$0xff]
      %v157 = vld [vmem:[%s3 + $0x8] sm:$0xff]
      %v158 = vld [vmem:[%s3 + $0x10] sm:$0xff]
      %v159 = vld [vmem:[%s3 + $0x18] sm:$0xff]
      %v160 = vld [vmem:[%s4] sm:$0x1]
      %v162 = vlaneseq
      %v163 = vshrl.u32 %v162, 7
      %v164 = vsub.s32 0, %v163
      %v165 = vrot.slane %v160, %v164
      %vm167 = vcmask 261120
      %v169 = vsel %vm167, %v155, 0
      %171 = vmatprep.subr.mxu0 0.0
      %172 = vmatpush1.msra.mxu0 %v156
      %173 = vmatprep.subr.mxu0 0.0
      %174 = vmatpush1.msra.mxu0 %v157
      %175 = vmatprep.subr.mxu0 0.0
      %176 = vmatpush1.msra.mxu0 %v158
      %177 = vmatprep.subr.mxu0 0.0
      %178 = vmatpush1.msra.mxu0 %v159
      %179 = vmatprep.subr.mxu0 0.0
      %180 = vmatpush1.msra.mxu0 0.0
      %181 = vmatprep.subr.mxu0 0.0
      %182 = vmatpush1.msra.mxu0 0.0
      %183 = vmatprep.subr.mxu0 0.0
      %184 = vmatpush1.msra.mxu0 0.0
      %185 = vmatprep.subr.mxu0 0.0
      %186 = vmatpush1.msra.mxu0 0.0
      %187 = vmatprep.subr.mxu0 0.0
      %188 = vmatpush1.msra.mxu0 0.0
      %189 = vmatprep.subr.mxu0 0.0
      %190 = vmatpush1.msra.mxu0 0.0
      %191 = vmatprep.subr.mxu0 0.0
      %192 = vmatpush1.msra.mxu0 0.0
      %193 = vmatprep.subr.mxu0 0.0
      %194 = vmatpush1.msra.mxu0 0.0
      %195 = vmatprep.subr.mxu0 0.0
      %196 = vmatpush1.msra.mxu0 0.0
      %197 = vmatprep.subr.mxu0 0.0
      %198 = vmatpush1.msra.mxu0 0.0
      %199 = vmatprep.subr.mxu0 0.0
      %200 = vmatpush1.msra.mxu0 0.0
      %201 = vmatprep.subr.mxu0 0.0
      %202 = vmatpush1.msra.mxu0 0.0
      %203 = vmatprep.subr.mxu0 0.0
      %204 = vmatpush1.msra.mxu0 0.0
      %205 = vmatprep.subr.mxu0 0.0
      %206 = vmatpush1.msra.mxu0 0.0
      %207 = vmatprep.subr.mxu0 0.0
      %208 = vmatpush1.msra.mxu0 0.0
      %209 = vmatprep.subr.mxu0 0.0
      %210 = vmatpush1.msra.mxu0 0.0
      %211 = vmatprep.subr.mxu0 0.0
      %212 = vmatpush1.msra.mxu0 0.0
      %213 = vmatprep.subr.mxu0 0.0
      %214 = vmatpush1.msra.mxu0 0.0
      %215 = vmatprep.subr.mxu0 0.0
      %216 = vmatpush1.msra.mxu0 0.0
      %217 = vmatprep.subr.mxu0 0.0
      %218 = vmatpush1.msra.mxu0 0.0
      %219 = vmatprep.subr.mxu0 0.0
      %220 = vmatpush1.msra.mxu0 0.0
      %221 = vmatprep.subr.mxu0 0.0
      %222 = vmatpush1.msra.mxu0 0.0
      %223 = vmatprep.subr.mxu0 0.0
      %224 = vmatpush1.msra.mxu0 0.0
      %225 = vmatprep.subr.mxu0 0.0
      %226 = vmatpush1.msra.mxu0 0.0
      %227 = vmatprep.subr.mxu0 0.0
      %228 = vmatpush1.msra.mxu0 0.0
      %229 = vmatprep.subr.mxu0 0.0
      %230 = vmatpush1.msra.mxu0 0.0
      %231 = vmatprep.subr.mxu0 0.0
      %232 = vmatpush1.msra.mxu0 0.0
      %233 = vmatprep.subr.mxu0 0.0
      %234 = vmatpush1.msra.mxu0 0.0
      %235 = vmatprep.mubr.f32.mxu0 0.0
      %236 = vmatmul.mubr.f32.gmra.mrb[0].mxu0 %v169
      %v237 = vpop.f32.mrb[0].mxu0
      %v238 = vadd.f32 %v165, %v237
      %v239 = vpop.f32.mrb[0].mxu0
      %240 = vdwg.mxu0
      %vm241 = vcmask 58368
      %v242 = vsel %vm241, %v238, -inf
      %243 = vmax.xlane.f32.xlu0 %v242
      %v244 = vpop.xlane.xlu0 %243
      %v245 = vsub.f32 %v238, %v244
      %v246 = vmul.f32 %v245, 1.442695
      %v247 = vpow.pop %v246
      %v248 = vsel %vm241, %v247, 0.0
      %249 = vadd.xlane.f32.xlu0 %v248
      %v250 = vpop.xlane.xlu0 %249
      %v251 = vrcp.pop %v250
      %v252 = vmul.f32 %v250, %v251
      %v253 = vsub.f32 2.0, %v252
      %v254 = vmul.f32 %v251, %v253
      %v255 = vmul.f32 %v247, %v254
      %256 = vst.msk [vmem:[#allocation3] sm:$0x3] %vm241, %v255
    $region29: #{tpu_custom_call.1} parent=1 // pred_fallthru
      _
    // Predicated region
    $region30: #{tpu_custom_call.1} parent=1 // pred_check
      _
    $region31: #{tpu_custom_call.1} parent=1 // pred_check_branch
      %258 = sbr.rel (0) target = $region33
    $region32: #{tpu_custom_call.1} parent=1 // pred_region
      %s260 = ssub.s32 32, 32
      %261 = vsyncadd [#allocation4], %s260
      %s263 = sshll.u32 [#allocation3], 4
      %s264 = int_to_ptr.vmem [resolvable:$true] %s263
      %266 = dma.vmem_to_hbm [thread:$0]  %s264, 32, %s5, [#allocation4]
    $region33: #{tpu_custom_call.1} parent=1 // pred_fallthru
      _
    // Predicated region
    $region34: #{tpu_custom_call.1} parent=1 // pred_check
      _
    $region35: #{tpu_custom_call.1} parent=1 // pred_check_branch
      %268 = sbr.rel (0) target = $region37
    $region36: #{tpu_custom_call.1} parent=1 // pred_region
      %269 = dma.done [#allocation4], 32
    $region37: #{tpu_custom_call.1} parent=1 // pred_fallthru
      _
    %270 = vsyncpa [#allocation4], 1

</llo_original>
